<compile_context>
chip_gen: v6e
topology: v6e:2x2x1
jax: 0.10.0
libtpu: 0.0.40
codegen_flags: <defaults>
</compile_context>

<pallas_src>
import functools

import jax
import jax.numpy as jnp
from jax import lax
from jax.experimental import pallas as pl
from jax.experimental.pallas import tpu as pltpu


def _round_up(x: int, m: int) -> int:
    return (x + m - 1) // m * m


def _pick_batch_tile(B: int, w_in: int, out_len: int, w_work: int) -> int:
    """VMEM-budgeted batch tile (multiple of 8; ragged last tile is fine)."""
    if B <= 8:
        return B  # block batch dim == full array dim (legal for any B)
    # Double-buffered int32 footprint per batch row: 3 inputs + 3 outputs,
    # plus the (single-buffered) widening scratch.
    bytes_per_row = 2 * 3 * 4 * (w_in + out_len) + 4 * w_work
    vmem_budget = 8 << 20          # well under v5e's 16 MiB scoped default
    bt_vmem = max(8, vmem_budget // max(bytes_per_row, 1))
    # Aim for ~8 grid steps (input/output DMA pipelining); B-1 guarantees
    # >= 2 steps so the "parallel" batch axis can shard across v7x's 2 TCs.
    bt_steps = max(8, -(-B // 8))
    bt = min(bt_vmem, bt_steps, B - 1)
    return max(8, (bt // 8) * 8)


def _truncate_kernel(tok_ref, st_ref, en_ref,
                     tok_out, st_out, en_out,
                     pad_scratch,
                     *, bos_idx, eos_idx, bos_flag, eos_flag,
                     trunc_len, out_len, w_work):
    """Inputs: (bt, w_in) tiles. Outputs: (bt, out_len) tiles (final width)."""
    bt, w_in = tok_ref.shape
    widen = w_in < w_work

    # Column index + masks built ONCE and shared by all three arrays
    # (JAX does not CSE broadcast_in_dim; hoisting avoids 3x the VPU chain).
    col = lax.broadcasted_iota(jnp.int32, (bt, w_work), 1)
    if bos_flag:
        in_data = (col >= 1) & (col < 1 + trunc_len)
        is_bos = col == 0
    else:
        in_data = col < trunc_len
        is_bos = None
    is_eos = (col == out_len - 1) if eos_flag else None

    if widen:
        # Zero once; the data prefix is overwritten per array below.  The
        # masks already hide the tail, this just keeps the scratch defined.
        pad_scratch[...] = jnp.zeros((bt, w_work), jnp.int32)

    def emit(x_ref, o_ref, bos_val, eos_val):
        x = x_ref[...]
        if x.dtype != jnp.int32:
            x = x.astype(jnp.int32)          # dtype cast fused into the kernel
        if widen:
            # In-kernel pad to the lane-aligned working width (replaces the
            # old wrapper-side jnp.pad HBM pass).
            pad_scratch[:, :w_in] = x
            x = pad_scratch[...]
        if bos_flag:
            # Right-shift by one lane (XLU, hidden under DMA); the wrapped
            # lane 0 is overwritten by the BOS fill below.
            x = pltpu.roll(x, shift=1, axis=1)
        val = jnp.where(in_data, x, 0)
        if bos_flag:
            val = jnp.where(is_bos, jnp.int32(bos_val), val)
        if eos_flag:
            val = jnp.where(is_eos, jnp.int32(eos_val), val)
        o_ref[...] = val[:, :out_len] if out_len < w_work else val

    emit(tok_ref, tok_out, bos_idx, eos_idx)
    emit(st_ref, st_out, -1, -1)
    emit(en_ref, en_out, -1, -1)


def truncate_transform(token_ids, start_ids, end_ids,
                       *, bos_idx=-1, eos_idx=-1, max_seq_len=256):
    """JAX/Pallas equivalent of TruncateTransform.forward.

    Inputs: integer arrays of shape (B, L) (or 1-D (L,) for one sequence).
    Returns {'token_ids','start_ids','end_ids'} of shape (B, out_len) int32.
    """
    squeeze = token_ids.ndim == 1
    if squeeze:
        token_ids, start_ids, end_ids = (
            token_ids[None], start_ids[None], end_ids[None])

    def prep(x):
        # Narrow-int -> int32 casts happen inside the kernel; only non-int /
        # 64-bit inputs need a wrapper cast (no i64 path on TPU).
        if jnp.issubdtype(x.dtype, jnp.integer) and x.dtype.itemsize <= 4:
            return x
        return x.astype(jnp.int32)

    token_ids, start_ids, end_ids = prep(token_ids), prep(start_ids), prep(end_ids)

    B, L = token_ids.shape
    assert start_ids.shape == (B, L) and end_ids.shape == (B, L)

    bos_flag = 1 if bos_idx >= 0 else 0
    eos_flag = 1 if eos_idx >= 0 else 0
    effective_max = max_seq_len - bos_flag - eos_flag
    trunc_len = max(0, min(L, effective_max))
    out_len = trunc_len + bos_flag + eos_flag

    def finish(t, s, e):
        if squeeze:
            t, s, e = t[0], s[0], e[0]
        return {"token_ids": t, "start_ids": s, "end_ids": e}

    # ---- short circuits: no kernel launch needed --------------------------
    if bos_flag == 0 and eos_flag == 0 and out_len == L:
        to32 = lambda x: x if x.dtype == jnp.int32 else x.astype(jnp.int32)
        return finish(to32(token_ids), to32(start_ids), to32(end_ids))

    if trunc_len == 0:
        # No data columns survive; outputs are just BOS/EOS constants.
        tok_cols, se_cols = [], []
        if bos_flag:
            tok_cols.append(jnp.full((B, 1), bos_idx, jnp.int32))
            se_cols.append(jnp.full((B, 1), -1, jnp.int32))
        if eos_flag:
            tok_cols.append(jnp.full((B, 1), eos_idx, jnp.int32))
            se_cols.append(jnp.full((B, 1), -1, jnp.int32))
        if tok_cols:
            tok = jnp.concatenate(tok_cols, axis=1)
            se = jnp.concatenate(se_cols, axis=1)
        else:
            tok = se = jnp.zeros((B, 0), jnp.int32)
        return finish(tok, se, se)

    # ---- tiling ------------------------------------------------------------
    # Input tile width: only the truncated prefix is DMA'd.  Either a multiple
    # of 128 (prefix of longer rows) or the full row L (short rows, widened
    # inside the kernel).
    w_in = min(L, _round_up(max(trunc_len, 1), 128))
    # Lane-aligned working width inside the kernel (keeps pltpu.roll aligned).
    w_work = _round_up(max(out_len, 1), 128)

    bt = _pick_batch_tile(B, w_in, out_len, w_work)
    nb = -(-B // bt)   # ragged last tile handled by Pallas edge-block padding

    kernel = functools.partial(
        _truncate_kernel,
        bos_idx=bos_idx, eos_idx=eos_idx,
        bos_flag=bos_flag, eos_flag=eos_flag,
        trunc_len=trunc_len, out_len=out_len, w_work=w_work)

    in_spec = pl.BlockSpec((bt, w_in), lambda b: (b, 0))
    out_spec = pl.BlockSpec((bt, out_len), lambda b: (b, 0))

    tok, st, en = pl.pallas_call(
        kernel,
        out_shape=[jax.ShapeDtypeStruct((B, out_len), jnp.int32)] * 3,
        grid=(nb,),
        in_specs=[in_spec, in_spec, in_spec],
        out_specs=[out_spec, out_spec, out_spec],
        scratch_shapes=[pltpu.VMEM((bt, w_work), jnp.int32)],
        compiler_params=pltpu.CompilerParams(
            dimension_semantics=("parallel",)),
    )(token_ids, start_ids, end_ids)

    return finish(tok, st, en)


# ---------------------------------------------------------------------------
# Pure-JAX reference + checks
# ---------------------------------------------------------------------------
def _reference(token_ids, start_ids, end_ids, *, bos_idx, eos_idx, max_seq_len):
    bos_flag = 1 if bos_idx >= 0 else 0
    eos_flag = 1 if eos_idx >= 0 else 0
    eff = max(0, max_seq_len - bos_flag - eos_flag)
    B = token_ids.shape[0]
    t, s, e = token_ids[:, :eff], start_ids[:, :eff], end_ids[:, :eff]
    if bos_flag:
        t = jnp.concatenate([jnp.full((B, 1), bos_idx, jnp.int32), t], axis=1)
        s = jnp.concatenate([jnp.full((B, 1), -1, jnp.int32), s], axis=1)
        e = jnp.concatenate([jnp.full((B, 1), -1, jnp.int32), e], axis=1)
    if eos_flag:
        t = jnp.concatenate([t, jnp.full((B, 1), eos_idx, jnp.int32)], axis=1)
        s = jnp.concatenate([s, jnp.full((B, 1), -1, jnp.int32)], axis=1)
        e = jnp.concatenate([e, jnp.full((B, 1), -1, jnp.int32)], axis=1)
    return {"token_ids": t, "start_ids": s, "end_ids": e}


def _check_case(key, B, L, bos_idx, eos_idx, max_seq_len, single=False):
    k1, k2, k3 = jax.random.split(key, 3)
    token_ids = jax.random.randint(k1, (B, L), 0, 100, dtype=jnp.int32)
    start_ids = jax.random.randint(k2, (B, L), 0, 500, dtype=jnp.int32)
    end_ids = jax.random.randint(k3, (B, L), 0, 500, dtype=jnp.int32)

    if single:
        out = truncate_transform(token_ids[0], start_ids[0], end_ids[0],
                                 bos_idx=bos_idx, eos_idx=eos_idx,
                                 max_seq_len=max_seq_len)
        out = {k: v[None] for k, v in out.items()}
    else:
        out = truncate_transform(token_ids, start_ids, end_ids,
                                 bos_idx=bos_idx, eos_idx=eos_idx,
                                 max_seq_len=max_seq_len)
    jax.block_until_ready(out)

    ref = _reference(token_ids, start_ids, end_ids,
                     bos_idx=bos_idx, eos_idx=eos_idx, max_seq_len=max_seq_len)
    for name in ("token_ids", "start_ids", "end_ids"):
        assert out[name].shape == ref[name].shape, (
            name, out[name].shape, ref[name].shape)
        assert bool(jnp.all(out[name] == ref[name])), (
            name, out[name], ref[name])


if __name__ == "__main__":
    key = jax.random.PRNGKey(0)
    keys = jax.random.split(key, 6)

    # Truncation + BOS + EOS; short rows widened in-kernel (no wrapper pad).
    _check_case(keys[0], B=8, L=20, bos_idx=101, eos_idx=102, max_seq_len=16)
    # Long rows: prefix-only input DMA; output emitted at final width 256.
    _check_case(keys[1], B=8, L=300, bos_idx=5, eos_idx=6, max_seq_len=256)
    # EOS only, no truncation needed.
    _check_case(keys[2], B=4, L=10, bos_idx=-1, eos_idx=7, max_seq_len=64)
    # Single 1-D sequence (original torch usage pattern).
    _check_case(keys[3], B=1, L=20, bos_idx=101, eos_idx=102, max_seq_len=16,
                single=True)
    # Ragged last batch tile (B=12, bt=8 -> 2 grid steps).
    _check_case(keys[4], B=12, L=40, bos_idx=1, eos_idx=2, max_seq_len=32)
    # out_len crosses a 128 boundary above trunc_len: 128-wide input DMA,
    # 130-wide output (decoupled in/out widths, aligned in-kernel widening).
    _check_case(keys[5], B=8, L=200, bos_idx=3, eos_idx=4, max_seq_len=130)
    # No-op configuration short-circuits without launching a kernel.
    _check_case(jax.random.PRNGKey(1), B=4, L=12, bos_idx=-1, eos_idx=-1,
                max_seq_len=64)

    print("KERNEL_OK")
</pallas_src>

<mosaic_0001>
module attributes {stable_mosaic.version = 11 : i64} {
  func.func @_truncate_kernel(%arg0: i32, %arg1: memref<8x20xi32, #tpu.memory_space<vmem>>, %arg2: memref<8x20xi32, #tpu.memory_space<vmem>>, %arg3: memref<8x20xi32, #tpu.memory_space<vmem>>, %arg4: memref<8x16xi32, #tpu.memory_space<vmem>>, %arg5: memref<8x16xi32, #tpu.memory_space<vmem>>, %arg6: memref<8x16xi32, #tpu.memory_space<vmem>>, %arg7: memref<8x128xi32, #tpu.memory_space<vmem>>) attributes {dimension_semantics = [#tpu.dimension_semantics<parallel>], iteration_bounds = array<i64: 1>, scalar_prefetch = 0 : i64, scratch_operands = 1 : i64, tpu.core_type = #tpu.core_type<tc>, window_params = [{transform_indices = @transform_0, window_bounds = array<i64: 8, 20>}, {transform_indices = @transform_1, window_bounds = array<i64: 8, 20>}, {transform_indices = @transform_2, window_bounds = array<i64: 8, 20>}, {transform_indices = @transform_3, window_bounds = array<i64: 8, 16>}, {transform_indices = @transform_4, window_bounds = array<i64: 8, 16>}, {transform_indices = @transform_5, window_bounds = array<i64: 8, 16>}]} {
    %0 = tpu.iota {dimensions = array<i32: 1>} : vector<8x128xi32>
    %c1_i32 = arith.constant 1 : i32
    %1 = vector.broadcast %c1_i32 : i32 to vector<8x128xi32>
    %2 = arith.cmpi sge, %0, %1 : vector<8x128xi32>
    %c15_i32 = arith.constant 15 : i32
    %3 = vector.broadcast %c15_i32 : i32 to vector<8x128xi32>
    %4 = arith.cmpi slt, %0, %3 : vector<8x128xi32>
    %5 = arith.andi %2, %4 : vector<8x128xi1>
    %c0_i32 = arith.constant 0 : i32
    %6 = vector.broadcast %c0_i32 : i32 to vector<8x128xi32>
    %7 = arith.cmpi eq, %0, %6 : vector<8x128xi32>
    %c15_i32_0 = arith.constant 15 : i32
    %8 = vector.broadcast %c15_i32_0 : i32 to vector<8x128xi32>
    %9 = arith.cmpi eq, %0, %8 : vector<8x128xi32>
    %c0_i32_1 = arith.constant 0 : i32
    %10 = vector.broadcast %c0_i32_1 : i32 to vector<8x128xi32>
    %c0 = arith.constant 0 : index
    %c0_2 = arith.constant 0 : index
    %11 = vector.load %arg7[%c0, %c0_2] : memref<8x128xi32, #tpu.memory_space<vmem>>, vector<8x128xi32>
    tpu.vector_store %arg7[%c0, %c0_2], %10 {strides = array<i32>} : memref<8x128xi32, #tpu.memory_space<vmem>>, vector<8x128xi32>,
    %c0_3 = arith.constant 0 : index
    %c0_4 = arith.constant 0 : index
    %12 = vector.load %arg1[%c0_3, %c0_4] : memref<8x20xi32, #tpu.memory_space<vmem>>, vector<8x20xi32>
    %c0_5 = arith.constant 0 : index
    %c0_6 = arith.constant 0 : index
    %13 = vector.load %arg7[%c0_5, %c0_6] : memref<8x128xi32, #tpu.memory_space<vmem>>, vector<8x20xi32>
    tpu.vector_store %arg7[%c0_5, %c0_6], %12 {strides = array<i32>} : memref<8x128xi32, #tpu.memory_space<vmem>>, vector<8x20xi32>,
    %c0_7 = arith.constant 0 : index
    %c0_8 = arith.constant 0 : index
    %14 = vector.load %arg7[%c0_7, %c0_8] : memref<8x128xi32, #tpu.memory_space<vmem>>, vector<8x128xi32>
    %c1_i32_9 = arith.constant 1 : i32
    %15 = tpu.dynamic_rotate %14 by %c1_i32_9 dim 1 : vector<8x128xi32>, i32 -> vector<8x128xi32>
    %c0_i32_10 = arith.constant 0 : i32
    %16 = vector.broadcast %c0_i32_10 : i32 to vector<8x128xi32>
    %17 = arith.select %5, %15, %16 : vector<8x128xi1>, vector<8x128xi32>
    %c101_i32 = arith.constant 101 : i32
    %18 = vector.broadcast %c101_i32 : i32 to vector<8x128xi32>
    %19 = arith.select %7, %18, %17 : vector<8x128xi1>, vector<8x128xi32>
    %c102_i32 = arith.constant 102 : i32
    %20 = vector.broadcast %c102_i32 : i32 to vector<8x128xi32>
    %21 = arith.select %9, %20, %19 : vector<8x128xi1>, vector<8x128xi32>
    %22 = vector.extract_strided_slice %21 {offsets = [0, 0], sizes = [8, 16], strides = [1, 1]} : vector<8x128xi32> to vector<8x16xi32>
    %c0_11 = arith.constant 0 : index
    %c0_12 = arith.constant 0 : index
    %23 = vector.load %arg4[%c0_11, %c0_12] : memref<8x16xi32, #tpu.memory_space<vmem>>, vector<8x16xi32>
    tpu.vector_store %arg4[%c0_11, %c0_12], %22 {strides = array<i32>} : memref<8x16xi32, #tpu.memory_space<vmem>>, vector<8x16xi32>,
    %c0_13 = arith.constant 0 : index
    %c0_14 = arith.constant 0 : index
    %24 = vector.load %arg2[%c0_13, %c0_14] : memref<8x20xi32, #tpu.memory_space<vmem>>, vector<8x20xi32>
    %c0_15 = arith.constant 0 : index
    %c0_16 = arith.constant 0 : index
    %25 = vector.load %arg7[%c0_15, %c0_16] : memref<8x128xi32, #tpu.memory_space<vmem>>, vector<8x20xi32>
    tpu.vector_store %arg7[%c0_15, %c0_16], %24 {strides = array<i32>} : memref<8x128xi32, #tpu.memory_space<vmem>>, vector<8x20xi32>,
    %c0_17 = arith.constant 0 : index
    %c0_18 = arith.constant 0 : index
    %26 = vector.load %arg7[%c0_17, %c0_18] : memref<8x128xi32, #tpu.memory_space<vmem>>, vector<8x128xi32>
    %c1_i32_19 = arith.constant 1 : i32
    %27 = tpu.dynamic_rotate %26 by %c1_i32_19 dim 1 : vector<8x128xi32>, i32 -> vector<8x128xi32>
    %c0_i32_20 = arith.constant 0 : i32
    %28 = vector.broadcast %c0_i32_20 : i32 to vector<8x128xi32>
    %29 = arith.select %5, %27, %28 : vector<8x128xi1>, vector<8x128xi32>
    %c-1_i32 = arith.constant -1 : i32
    %30 = vector.broadcast %c-1_i32 : i32 to vector<8x128xi32>
    %31 = arith.select %7, %30, %29 : vector<8x128xi1>, vector<8x128xi32>
    %c-1_i32_21 = arith.constant -1 : i32
    %32 = vector.broadcast %c-1_i32_21 : i32 to vector<8x128xi32>
    %33 = arith.select %9, %32, %31 : vector<8x128xi1>, vector<8x128xi32>
    %34 = vector.extract_strided_slice %33 {offsets = [0, 0], sizes = [8, 16], strides = [1, 1]} : vector<8x128xi32> to vector<8x16xi32>
    %c0_22 = arith.constant 0 : index
    %c0_23 = arith.constant 0 : index
    %35 = vector.load %arg5[%c0_22, %c0_23] : memref<8x16xi32, #tpu.memory_space<vmem>>, vector<8x16xi32>
    tpu.vector_store %arg5[%c0_22, %c0_23], %34 {strides = array<i32>} : memref<8x16xi32, #tpu.memory_space<vmem>>, vector<8x16xi32>,
    %c0_24 = arith.constant 0 : index
    %c0_25 = arith.constant 0 : index
    %36 = vector.load %arg3[%c0_24, %c0_25] : memref<8x20xi32, #tpu.memory_space<vmem>>, vector<8x20xi32>
    %c0_26 = arith.constant 0 : index
    %c0_27 = arith.constant 0 : index
    %37 = vector.load %arg7[%c0_26, %c0_27] : memref<8x128xi32, #tpu.memory_space<vmem>>, vector<8x20xi32>
    tpu.vector_store %arg7[%c0_26, %c0_27], %36 {strides = array<i32>} : memref<8x128xi32, #tpu.memory_space<vmem>>, vector<8x20xi32>,
    %c0_28 = arith.constant 0 : index
    %c0_29 = arith.constant 0 : index
    %38 = vector.load %arg7[%c0_28, %c0_29] : memref<8x128xi32, #tpu.memory_space<vmem>>, vector<8x128xi32>
    %c1_i32_30 = arith.constant 1 : i32
    %39 = tpu.dynamic_rotate %38 by %c1_i32_30 dim 1 : vector<8x128xi32>, i32 -> vector<8x128xi32>
    %c0_i32_31 = arith.constant 0 : i32
    %40 = vector.broadcast %c0_i32_31 : i32 to vector<8x128xi32>
    %41 = arith.select %5, %39, %40 : vector<8x128xi1>, vector<8x128xi32>
    %c-1_i32_32 = arith.constant -1 : i32
    %42 = vector.broadcast %c-1_i32_32 : i32 to vector<8x128xi32>
    %43 = arith.select %7, %42, %41 : vector<8x128xi1>, vector<8x128xi32>
    %c-1_i32_33 = arith.constant -1 : i32
    %44 = vector.broadcast %c-1_i32_33 : i32 to vector<8x128xi32>
    %45 = arith.select %9, %44, %43 : vector<8x128xi1>, vector<8x128xi32>
    %46 = vector.extract_strided_slice %45 {offsets = [0, 0], sizes = [8, 16], strides = [1, 1]} : vector<8x128xi32> to vector<8x16xi32>
    %c0_34 = arith.constant 0 : index
    %c0_35 = arith.constant 0 : index
    %47 = vector.load %arg6[%c0_34, %c0_35] : memref<8x16xi32, #tpu.memory_space<vmem>>, vector<8x16xi32>
    tpu.vector_store %arg6[%c0_34, %c0_35], %46 {strides = array<i32>} : memref<8x16xi32, #tpu.memory_space<vmem>>, vector<8x16xi32>,
    return
  }
  func.func @transform_0(%arg0: i32) -> (i32, i32) {
    %c0_i32 = arith.constant 0 : i32
    %c0_i32_0 = arith.constant 0 : i32
    return %arg0, %c0_i32 : i32, i32
  }
  func.func @transform_1(%arg0: i32) -> (i32, i32) {
    %c0_i32 = arith.constant 0 : i32
    %c0_i32_0 = arith.constant 0 : i32
    return %arg0, %c0_i32 : i32, i32
  }
  func.func @transform_2(%arg0: i32) -> (i32, i32) {
    %c0_i32 = arith.constant 0 : i32
    %c0_i32_0 = arith.constant 0 : i32
    return %arg0, %c0_i32 : i32, i32
  }
  func.func @transform_3(%arg0: i32) -> (i32, i32) {
    %c0_i32 = arith.constant 0 : i32
    %c0_i32_0 = arith.constant 0 : i32
    return %arg0, %c0_i32 : i32, i32
  }
  func.func @transform_4(%arg0: i32) -> (i32, i32) {
    %c0_i32 = arith.constant 0 : i32
    %c0_i32_0 = arith.constant 0 : i32
    return %arg0, %c0_i32 : i32, i32
  }
  func.func @transform_5(%arg0: i32) -> (i32, i32) {
    %c0_i32 = arith.constant 0 : i32
    %c0_i32_0 = arith.constant 0 : i32
    return %arg0, %c0_i32 : i32, i32
  }
}

</mosaic_0001>

<llo_original>
// kernel: tpu_custom_call.1
$region0: #{tpu_custom_call.1}
  #allocation0 [shape = 'u32[]', space=smem, size = 0x4, offset = 0x4, fixed_abs, tag = 'smem constant byte address 0x4 - core index']
  #allocation1 [shape = 'u32[144,128]{1,0:T(1,128)}', space=vmem, size = 0x12000, scoped, tag = 'internal scratch']
  #allocation2 [shape = 's32[8,128]{1,0:T(8,128)}', space=vmem, size = 0x1000, scoped, tag = 'scratch operand']
  %s0 = inlined_call_operand.hbm [shape: s32[8,20], index: 0, kind: input, shape index: {}]
  %s1 = inlined_call_operand.hbm [shape: s32[8,20], index: 1, kind: input, shape index: {}]
  %s2 = inlined_call_operand.hbm [shape: s32[8,20], index: 2, kind: input, shape index: {}]
  %s3 = inlined_call_operand.hbm [shape: s32[8,16], index: 3, kind: output, shape index: {0}]
  %s4 = inlined_call_operand.hbm [shape: s32[8,16], index: 4, kind: output, shape index: {1}]
  %s5 = inlined_call_operand.hbm [shape: s32[8,16], index: 5, kind: output, shape index: {2}]
  %6 = xla_tuple %s3, %s4, %s5
  %s7 = sld [smem:[#allocation0]]
  $region50: #{tpu_custom_call.1} parent=0
    _
  %s9 = ssub.s32 1, %s7
  %s10 = scalar_select 0, %s9, %s7
  $region1: #{tpu_custom_call.1} parent=0
    #allocation3 [shape = 'u8[4096]{0}', space=vmem, size = 0x1000, scoped, tag = 'input window, operand 0, single buffered']
    #allocation4 [shape = 's32[1]{0}', space=sflag, size = 0x4, scoped, tag = 'scoped memory for tpu_custom_call.1']
    #allocation5 [shape = 's32[1]{0}', space=sflag, size = 0x4, scoped, tag = 'scoped memory for tpu_custom_call.1']
    #allocation6 [shape = 'u8[4096]{0}', space=vmem, size = 0x1000, scoped, tag = 'input window, operand 1, single buffered']
    #allocation7 [shape = 's32[1]{0}', space=sflag, size = 0x4, scoped, tag = 'scoped memory for tpu_custom_call.1']
    #allocation8 [shape = 'u8[4096]{0}', space=vmem, size = 0x1000, scoped, tag = 'input window, operand 2, single buffered']
    #allocation9 [shape = 'u8[4096]{0}', space=vmem, size = 0x1000, scoped, tag = 'output window, operand 0, single buffered']
    #allocation10 [shape = 'u8[4096]{0}', space=vmem, size = 0x1000, scoped, tag = 'output window, operand 1, single buffered']
    #allocation11 [shape = 's32[1]{0}', space=sflag, size = 0x4, scoped, tag = 'scoped memory for tpu_custom_call.1']
    #allocation12 [shape = 'u8[4096]{0}', space=vmem, size = 0x1000, scoped, tag = 'output window, operand 2, single buffered']
    %11 = vsyncpa [#allocation4], 0
    %12 = vsyncpa [#allocation7], 0
    %13 = vsyncpa [#allocation5], 0
    %14 = vsyncpa [#allocation11], 0
    // Predicated region
    $region2: #{tpu_custom_call.1} parent=1 // pred_check
      _
    $region3: #{tpu_custom_call.1} parent=1 // pred_check_branch
      %16 = sbr.rel (0) target = $region5
    $region4: #{tpu_custom_call.1} parent=1 // pred_region
      %s18 = ssub.s32 128, 128
      %19 = vsyncadd [#allocation4], %s18
      %s21 = sshll.u32 [#allocation3], 4
      %s22 = int_to_ptr.vmem [resolvable:$true] %s21
      %24 = dma.hbm_to_vmem [thread:$0]  %s0, 128, %s22, [#allocation4]
    $region5: #{tpu_custom_call.1} parent=1 // pred_fallthru
      _
    // Predicated region
    $region6: #{tpu_custom_call.1} parent=1 // pred_check
      _
    $region7: #{tpu_custom_call.1} parent=1 // pred_check_branch
      %26 = sbr.rel (0) target = $region9
    $region8: #{tpu_custom_call.1} parent=1 // pred_region
      %s28 = ssub.s32 128, 128
      %29 = vsyncadd [#allocation7], %s28
      %s31 = sshll.u32 [#allocation6], 4
      %s32 = int_to_ptr.vmem [resolvable:$true] %s31
      %34 = dma.hbm_to_vmem [thread:$0]  %s1, 128, %s32, [#allocation7]
    $region9: #{tpu_custom_call.1} parent=1 // pred_fallthru
      _
    // Predicated region
    $region10: #{tpu_custom_call.1} parent=1 // pred_check
      _
    $region11: #{tpu_custom_call.1} parent=1 // pred_check_branch
      %36 = sbr.rel (0) target = $region13
    $region12: #{tpu_custom_call.1} parent=1 // pred_region
      %s38 = ssub.s32 128, 128
      %39 = vsyncadd [#allocation7], %s38
      %s41 = sshll.u32 [#allocation8], 4
      %s42 = int_to_ptr.vmem [resolvable:$true] %s41
      %44 = dma.hbm_to_vmem [thread:$0]  %s2, 128, %s42, [#allocation7]
    $region13: #{tpu_custom_call.1} parent=1 // pred_fallthru
      _
    // Predicated region
    $region14: #{tpu_custom_call.1} parent=1 // pred_check
      _
    $region15: #{tpu_custom_call.1} parent=1 // pred_check_branch
      %46 = sbr.rel (0) target = $region17
    $region16: #{tpu_custom_call.1} parent=1 // pred_region
      %47 = dma.done [#allocation4], 128
    $region17: #{tpu_custom_call.1} parent=1 // pred_fallthru
      _
    // Predicated region
    $region18: #{tpu_custom_call.1} parent=1 // pred_check
      _
    $region19: #{tpu_custom_call.1} parent=1 // pred_check_branch
      %49 = sbr.rel (0) target = $region21
    $region20: #{tpu_custom_call.1} parent=1 // pred_region
      %50 = dma.done [#allocation7], 128
    $region21: #{tpu_custom_call.1} parent=1 // pred_fallthru
      _
    // Predicated region
    $region22: #{tpu_custom_call.1} parent=1 // pred_check
      _
    $region23: #{tpu_custom_call.1} parent=1 // pred_check_branch
      %52 = sbr.rel (0) target = $region25
    $region24: #{tpu_custom_call.1} parent=1 // pred_region
      %53 = dma.done [#allocation7], 128
    $region25: #{tpu_custom_call.1} parent=1 // pred_fallthru
      _
    %v54 = vlaneseq
    %v55 = vand.u32 %v54, 127
    %vm56 = vcmp.ge.s32.totalorder %v55, 1
    %vm57 = vcmp.lt.s32.totalorder %v55, 15
    %vm58 = vmand %vm56, %vm57
    %vm59 = vcmp.eq.s32.totalorder %v55, 0
    %vm60 = vcmp.eq.s32.totalorder %v55, 15
    %61 = vst [vmem:[#allocation2] sm:$0xff] 0
    %v62 = vld [vmem:[#allocation3] sm:$0xff]
    %vm63 = vcmask 162816
    %64 = vst.msk [vmem:[#allocation2] sm:$0xff] %vm63, %v62
    %v65 = vld [vmem:[#allocation2] sm:$0xff]
    %66 = vrot.lane.b32.xlu0 %v65, 1
    %v67 = vpop.permute.xlu0 %66
    %v68 = vsel %vm58, %v67, 0
    %v69 = vsel %vm59, 101, %v68
    %v70 = vsel %vm60, 102, %v69
    %vm71 = vcmask 130048
    %72 = vst.msk [vmem:[#allocation9] sm:$0xff] %vm71, %v70
    %v73 = vld [vmem:[#allocation6] sm:$0xff]
    %74 = vst.msk [vmem:[#allocation2] sm:$0xff] %vm63, %v73
    %v75 = vld [vmem:[#allocation2] sm:$0xff]
    %76 = vrot.lane.b32.xlu0 %v75, 1
    %v77 = vpop.permute.xlu0 %76
    %v78 = vsel %vm58, %v77, 0
    %v79 = vsel %vm59, 4294967295, %v78
    %v80 = vsel %vm60, 4294967295, %v79
    %81 = vst.msk [vmem:[#allocation10] sm:$0xff] %vm71, %v80
    %v82 = vld [vmem:[#allocation8] sm:$0xff]
    %83 = vst.msk [vmem:[#allocation2] sm:$0xff] %vm63, %v82
    %v84 = vld [vmem:[#allocation2] sm:$0xff]
    %85 = vrot.lane.b32.xlu0 %v84, 1
    %v86 = vpop.permute.xlu0 %85
    %v87 = vsel %vm58, %v86, 0
    %v88 = vsel %vm59, 4294967295, %v87
    %v89 = vsel %vm60, 4294967295, %v88
    %90 = vst.msk [vmem:[#allocation12] sm:$0xff] %vm71, %v89
    // Predicated region
    $region26: #{tpu_custom_call.1} parent=1 // pred_check
      _
    $region27: #{tpu_custom_call.1} parent=1 // pred_check_branch
      %92 = sbr.rel (0) target = $region29
    $region28: #{tpu_custom_call.1} parent=1 // pred_region
      %s94 = ssub.s32 128, 128
      %95 = vsyncadd [#allocation5], %s94
      %s97 = sshll.u32 [#allocation9], 4
      %s98 = int_to_ptr.vmem [resolvable:$true] %s97
      %100 = dma.vmem_to_hbm [thread:$0]  %s98, 128, %s3, [#allocation5]
    $region29: #{tpu_custom_call.1} parent=1 // pred_fallthru
      _
    // Predicated region
    $region30: #{tpu_custom_call.1} parent=1 // pred_check
      _
    $region31: #{tpu_custom_call.1} parent=1 // pred_check_branch
      %102 = sbr.rel (0) target = $region33
    $region32: #{tpu_custom_call.1} parent=1 // pred_region
      %s104 = ssub.s32 128, 128
      %105 = vsyncadd [#allocation11], %s104
      %s107 = sshll.u32 [#allocation10], 4
      %s108 = int_to_ptr.vmem [resolvable:$true] %s107
      %110 = dma.vmem_to_hbm [thread:$0]  %s108, 128, %s4, [#allocation11]
    $region33: #{tpu_custom_call.1} parent=1 // pred_fallthru
      _
    // Predicated region
    $region34: #{tpu_custom_call.1} parent=1 // pred_check
      _
    $region35: #{tpu_custom_call.1} parent=1 // pred_check_branch
      %112 = sbr.rel (0) target = $region37
    $region36: #{tpu_custom_call.1} parent=1 // pred_region
      %s114 = ssub.s32 128, 128
      %115 = vsyncadd [#allocation11], %s114
      %s117 = sshll.u32 [#allocation12], 4
      %s118 = int_to_ptr.vmem [resolvable:$true] %s117
      %120 = dma.vmem_to_hbm [thread:$0]  %s118, 128, %s5, [#allocation11]
    $region37: #{tpu_custom_call.1} parent=1 // pred_fallthru
      _
    // Predicated region
    $region38: #{tpu_custom_call.1} parent=1 // pred_check
      _
    $region39: #{tpu_custom_call.1} parent=1 // pred_check_branch
      %122 = sbr.rel (0) target = $region41
    $region40: #{tpu_custom_call.1} parent=1 // pred_region
      %123 = dma.done [#allocation5], 128
    $region41: #{tpu_custom_call.1} parent=1 // pred_fallthru
      _
    // Predicated region
    $region42: #{tpu_custom_call.1} parent=1 // pred_check
      _
    $region43: #{tpu_custom_call.1} parent=1 // pred_check_branch
      %125 = sbr.rel (0) target = $region45
    $region44: #{tpu_custom_call.1} parent=1 // pred_region
      %126 = dma.done [#allocation11], 128
    $region45: #{tpu_custom_call.1} parent=1 // pred_fallthru
      _
    // Predicated region
    $region46: #{tpu_custom_call.1} parent=1 // pred_check
      _
    $region47: #{tpu_custom_call.1} parent=1 // pred_check_branch
      %128 = sbr.rel (0) target = $region49
    $region48: #{tpu_custom_call.1} parent=1 // pred_region
      %129 = dma.done [#allocation11], 128
    $region49: #{tpu_custom_call.1} parent=1 // pred_fallthru
      _
    %130 = vsyncpa [#allocation4], 1
    %131 = vsyncpa [#allocation7], 1
    %132 = vsyncpa [#allocation5], 1
    %133 = vsyncpa [#allocation11], 1

</llo_original>
